<compile_context>
chip_gen: v7x
topology: tpu7x:2x2x1
jax: 0.10.0
libtpu: 0.0.40
codegen_flags: <defaults>
</compile_context>

<pallas_src>
import functools

import jax
import jax.numpy as jnp
from jax.experimental import pallas as pl
from jax.experimental.pallas import tpu as pltpu


def _round_up(v: int, m: int) -> int:
    return ((v + m - 1) // m) * m


def gcn_kernel(adj_ref, x_ref, o_ref, *, tk: int):
    """o[i-tile] += Ahat[i-tile, k-tile] @ x[k-tile, :], accumulated in f32 in o_ref.

    adj_ref: (tm, tk) bf16 tile of the normalized adjacency (hot, streamed).
    x_ref:   (n_pad_k, f_pad) full feature matrix, VMEM-resident (constant index_map).
    o_ref:   (tm, f_pad) f32 output block, resident across the K loop -> accumulator.
    """
    k = pl.program_id(1)

    @pl.when(k == 0)
    def _():
        o_ref[...] = jnp.zeros_like(o_ref)

    start = pl.multiple_of(k * tk, tk)
    o_ref[...] += jnp.dot(adj_ref[...], x_ref[pl.ds(start, tk), :],
                          preferred_element_type=jnp.float32)


@functools.partial(jax.jit, static_argnames=("tm", "tk", "compute_dtype"))
def modelfree_gcn_forward(x, edge_index, edge_weight, *,
                          tm=512, tk=2048, compute_dtype=jnp.bfloat16):
    """x: (N, F) float32, edge_index: (2, E) int32, edge_weight: (E,) float32."""
    n, f = x.shape

    # ---------------- glue: gcn_norm with add_remaining_self_loops semantics -------------
    row, col = edge_index[0], edge_index[1]
    ew = edge_weight.astype(jnp.float32)

    # add_remaining_self_loops: existing self-loop edges are replaced by a single
    # per-node loop whose weight is the existing self-loop weight (fill value 1 otherwise).
    is_loop = row == col
    loop_w = jnp.ones((n,), jnp.float32)
    loop_w = loop_w.at[jnp.where(is_loop, row, n)].set(          # OOB index n -> dropped
        jnp.where(is_loop, ew, 1.0), mode="drop")
    ew = jnp.where(is_loop, 0.0, ew)                             # original loops contribute 0

    loop_idx = jnp.arange(n, dtype=row.dtype)
    row_all = jnp.concatenate([row, loop_idx])
    col_all = jnp.concatenate([col, loop_idx])
    w_all = jnp.concatenate([ew, loop_w])

    deg = jnp.zeros((n,), jnp.float32).at[col_all].add(w_all)
    dinv = jnp.where(deg > 0, jax.lax.rsqrt(deg), 0.0)
    norm = dinv[row_all] * w_all * dinv[col_all]

    # ---------------- tile sizes: small-N fast path + v7x 2-TC row split ------------------
    f_pad = max(128, _round_up(f, 128))          # lane-dense output; do NOT pad further
    n_256 = _round_up(max(n, 1), 256)
    tm = min(tm, max(256, 256 * ((n_256 // 256) // 2)))   # >=2 row tiles once n_pad >= 512
    tk = min(tk, n_256)
    n_pad_m = _round_up(n, tm)                   # row axis padded to a multiple of tm
    n_pad_k = _round_up(n, tk)                   # contraction axis padded to a multiple of tk

    # ---------------- build padded, compute-dtype operands directly ----------------------
    # out[i] = sum_{e: col_e = i} norm_e * x[row_e]   =>   Ahat[col, row] += norm
    # Scatter straight into the padded compute-dtype buffer (no extra pad/cast pass).
    adj_p = jnp.zeros((n_pad_m, n_pad_k), compute_dtype).at[col_all, row_all].add(
        norm.astype(compute_dtype))
    x_p = jnp.zeros((n_pad_k, f_pad), compute_dtype).at[:n, :f].set(
        x.astype(compute_dtype))

    grid = (n_pad_m // tm, n_pad_k // tk)

    # ---------------- VMEM budget (adj double-buffer + resident x + out block) -----------
    itm = jnp.dtype(compute_dtype).itemsize
    vmem_est = (2 * tm * tk * itm            # adjacency tiles (double-buffered)
                + 2 * n_pad_k * f_pad * itm  # resident x (conservative x2)
                + 2 * tm * f_pad * 4)        # f32 output/accumulator block
    vmem_limit = int(min(max(vmem_est + (8 << 20), 32 << 20), 48 << 20))  # safe on v7x 64MiB

    out_p = pl.pallas_call(
        functools.partial(gcn_kernel, tk=tk),
        out_shape=jax.ShapeDtypeStruct((n_pad_m, f_pad), jnp.float32),
        grid_spec=pltpu.PrefetchScalarGridSpec(
            num_scalar_prefetch=0,
            grid=grid,
            in_specs=[
                pl.BlockSpec((tm, tk), lambda i, k: (i, k)),            # Ahat tile (streamed)
                pl.BlockSpec((n_pad_k, f_pad), lambda i, k: (0, 0)),    # x: resident, one DMA
            ],
            out_specs=pl.BlockSpec((tm, f_pad), lambda i, k: (i, 0)),   # resident accumulator
        ),
        compiler_params=pltpu.CompilerParams(
            dimension_semantics=("parallel", "arbitrary"),
            vmem_limit_bytes=vmem_limit),
    )(adj_p, x_p)

    return out_p[:n, :f]


if __name__ == "__main__":
    key = jax.random.PRNGKey(0)
    k1, k2, k3, k4 = jax.random.split(key, 4)

    # CHICKENPOX-style small graph: N nodes, F node features (lags), E edges.
    N, F, E = 16, 8, 40

    x = jax.random.normal(k1, (N, F), dtype=jnp.float32)

    src = jax.random.randint(k2, (E,), 0, N, dtype=jnp.int32)
    dst = jax.random.randint(k3, (E,), 0, N, dtype=jnp.int32)
    # keep the test graph free of explicit self loops (gcn_norm adds weight-1 loops itself)
    dst = jnp.where(dst == src, (dst + 1) % N, dst)
    edge_index = jnp.stack([src, dst], axis=0)
    edge_weight = jax.random.uniform(k4, (E,), dtype=jnp.float32,
                                     minval=0.1, maxval=1.0)

    h = modelfree_gcn_forward(x, edge_index, edge_weight)
    jax.block_until_ready(h)
    assert h.shape == (N, F)

    # pure-JAX f32 reference of the same math (no self loops in input -> simple form)
    row, col = edge_index[0], edge_index[1]
    loop = jnp.arange(N, dtype=jnp.int32)
    r = jnp.concatenate([row, loop]); c = jnp.concatenate([col, loop])
    w = jnp.concatenate([edge_weight, jnp.ones((N,), jnp.float32)])
    deg = jnp.zeros((N,)).at[c].add(w)
    dis = jnp.where(deg > 0, 1.0 / jnp.sqrt(deg), 0.0)
    norm = dis[r] * w * dis[c]
    ref = jnp.zeros((N, F)).at[c].add(norm[:, None] * x[r])
    # bf16 inputs, f32 accumulation -> ~0.5% relative error budget
    assert jnp.allclose(h, ref, atol=5e-2, rtol=5e-2), "mismatch vs reference"

    print("KERNEL_OK")
</pallas_src>

<mosaic_0001>
module attributes {stable_mosaic.version = 11 : i64} {
  func.func @gcn_kernel(%arg0: i32, %arg1: i32, %arg2: memref<256x256xbf16, #tpu.memory_space<vmem>>, %arg3: memref<256x128xbf16, #tpu.memory_space<vmem>>, %arg4: memref<256x128xf32, #tpu.memory_space<vmem>>) attributes {dimension_semantics = [#tpu.dimension_semantics<parallel>, #tpu.dimension_semantics<arbitrary>], iteration_bounds = array<i64: 1, 1>, scalar_prefetch = 0 : i64, scratch_operands = 0 : i64, tpu.core_type = #tpu.core_type<tc>, window_params = [{transform_indices = @transform_0, window_bounds = array<i64: 256, 256>}, {pipeline_mode = #tpu.pipeline_mode<synchronous>, transform_indices = @transform_1, window_bounds = array<i64: 256, 128>}, {transform_indices = @transform_2, window_bounds = array<i64: 256, 128>}]} {
    %c0_i32 = arith.constant 0 : i32
    %0 = arith.cmpi eq, %arg1, %c0_i32 : i32
    %1 = arith.extui %0 : i1 to i32
    %c0_i32_0 = arith.constant 0 : i32
    %2 = arith.cmpi ne, %1, %c0_i32_0 : i32
    scf.if %2 {
      %cst_7 = arith.constant 0.000000e+00 : f32
      %12 = vector.broadcast %cst_7 : f32 to vector<256x128xf32>
      %c0_8 = arith.constant 0 : index
      %c0_9 = arith.constant 0 : index
      %13 = vector.load %arg4[%c0_8, %c0_9] : memref<256x128xf32, #tpu.memory_space<vmem>>, vector<256x128xf32>
      tpu.vector_store %arg4[%c0_8, %c0_9], %12 {strides = array<i32>} : memref<256x128xf32, #tpu.memory_space<vmem>>, vector<256x128xf32>,
    } else {
    }
    %c256_i32 = arith.constant 256 : i32
    %3 = arith.muli %arg1, %c256_i32 : i32
    %4 = tpu.assume_multiple %3, 256 : i32
    %c0 = arith.constant 0 : index
    %c0_1 = arith.constant 0 : index
    %5 = vector.load %arg4[%c0, %c0_1] : memref<256x128xf32, #tpu.memory_space<vmem>>, vector<256x128xf32>
    %c0_2 = arith.constant 0 : index
    %c0_3 = arith.constant 0 : index
    %6 = vector.load %arg2[%c0_2, %c0_3] : memref<256x256xbf16, #tpu.memory_space<vmem>>, vector<256x256xbf16>
    %7 = arith.index_cast %4 : i32 to index
    %c0_4 = arith.constant 0 : index
    %8 = vector.load %arg3[%7, %c0_4] : memref<256x128xbf16, #tpu.memory_space<vmem>>, vector<256x128xbf16>
    %cst = arith.constant dense<0.000000e+00> : vector<256x128xf32>
    %9 = tpu.matmul %6, %8, %cst {dimension_numbers = #tpu.dot_dimension_numbers<[1], [0], [0], [1], [0, 0, 1, 1], [], []>} : vector<256x256xbf16>, vector<256x128xbf16>, vector<256x128xf32> -> vector<256x128xf32>
    %10 = arith.addf %5, %9 : vector<256x128xf32>
    %c0_5 = arith.constant 0 : index
    %c0_6 = arith.constant 0 : index
    %11 = vector.load %arg4[%c0_5, %c0_6] : memref<256x128xf32, #tpu.memory_space<vmem>>, vector<256x128xf32>
    tpu.vector_store %arg4[%c0_5, %c0_6], %10 {strides = array<i32>} : memref<256x128xf32, #tpu.memory_space<vmem>>, vector<256x128xf32>,
    return
  }
  func.func @transform_0(%arg0: i32, %arg1: i32) -> (i32, i32) {
    %c0_i32 = arith.constant 0 : i32
    return %arg0, %arg1 : i32, i32
  }
  func.func @transform_1(%arg0: i32, %arg1: i32) -> (i32, i32) {
    %c0_i32 = arith.constant 0 : i32
    %c0_i32_0 = arith.constant 0 : i32
    %c0_i32_1 = arith.constant 0 : i32
    return %c0_i32, %c0_i32_0 : i32, i32
  }
  func.func @transform_2(%arg0: i32, %arg1: i32) -> (i32, i32) {
    %c0_i32 = arith.constant 0 : i32
    %c0_i32_0 = arith.constant 0 : i32
    return %arg0, %c0_i32 : i32, i32
  }
}

</mosaic_0001>

<llo_original>
// kernel: modelfree_gcn_forward.1
$region0: #{modelfree_gcn_forward.1}
  #allocation0 [shape = 'u32[]', space=smem, size = 0x4, offset = 0x4, fixed_abs, tag = 'smem constant byte address 0x4 - core index']
  #allocation1 [shape = 'u32[144,128]{1,0:T(1,128)}', space=vmem, size = 0x12000, scoped, tag = 'internal scratch']
  %s0 = inlined_call_operand.vmem [shape: bf16[256,256], index: 0, kind: input, shape index: {}]
  %s1 = inlined_call_operand.vmem [shape: bf16[256,128], index: 1, kind: input, shape index: {}]
  %s2 = inlined_call_operand.vmem [shape: f32[256,128], index: 2, kind: output, shape index: {}]
  %s3 = sld [smem:[#allocation0]]
  $region22: #{modelfree_gcn_forward.1} parent=0
    _
  %s5 = ssub.s32 1, %s3
  %s6 = scalar_select 0, %s5, %s3
  // Predicated region
  $region2: #{modelfree_gcn_forward.1} parent=0 // pred_check
    _
  $region3: #{modelfree_gcn_forward.1} parent=0 // pred_check_branch
    %8 = sbr.rel (0) target = $region5
  $region4: #{modelfree_gcn_forward.1} parent=0 // pred_region
    _
  $region5: #{modelfree_gcn_forward.1} parent=0 // pred_fallthru
    _
  // Predicated region
  $region6: #{modelfree_gcn_forward.1} parent=0 // pred_check
    _
  $region7: #{modelfree_gcn_forward.1} parent=0 // pred_check_branch
    %10 = sbr.rel (0) target = $region9
  $region8: #{modelfree_gcn_forward.1} parent=0 // pred_region
    _
  $region9: #{modelfree_gcn_forward.1} parent=0 // pred_fallthru
    _
  %p12 = scmp.eq.s32.totalorder 0, 0
  // Predicated region
  $region10: #{modelfree_gcn_forward.1} parent=0 // pred_check
    %p13 = pneg %p12
  $region11: #{modelfree_gcn_forward.1} parent=0 // pred_check_branch
    %15 = sbr.rel (%p13) target = $region13
  $region12: #{modelfree_gcn_forward.1} parent=0 // pred_region
    %16 = vst [vmem:[%s2] sm:$0xff] 0.0
    %17 = vst [vmem:[%s2 + $0x8] sm:$0xff] 0.0
    %18 = vst [vmem:[%s2 + $0x10] sm:$0xff] 0.0
    %19 = vst [vmem:[%s2 + $0x18] sm:$0xff] 0.0
    %20 = vst [vmem:[%s2 + $0x20] sm:$0xff] 0.0
    %21 = vst [vmem:[%s2 + $0x28] sm:$0xff] 0.0
    %22 = vst [vmem:[%s2 + $0x30] sm:$0xff] 0.0
    %23 = vst [vmem:[%s2 + $0x38] sm:$0xff] 0.0
    %24 = vst [vmem:[%s2 + $0x40] sm:$0xff] 0.0
    %25 = vst [vmem:[%s2 + $0x48] sm:$0xff] 0.0
    %26 = vst [vmem:[%s2 + $0x50] sm:$0xff] 0.0
    %27 = vst [vmem:[%s2 + $0x58] sm:$0xff] 0.0
    %28 = vst [vmem:[%s2 + $0x60] sm:$0xff] 0.0
    %29 = vst [vmem:[%s2 + $0x68] sm:$0xff] 0.0
    %30 = vst [vmem:[%s2 + $0x70] sm:$0xff] 0.0
    %31 = vst [vmem:[%s2 + $0x78] sm:$0xff] 0.0
    %32 = vst [vmem:[%s2 + $0x80] sm:$0xff] 0.0
    %33 = vst [vmem:[%s2 + $0x88] sm:$0xff] 0.0
    %34 = vst [vmem:[%s2 + $0x90] sm:$0xff] 0.0
    %35 = vst [vmem:[%s2 + $0x98] sm:$0xff] 0.0
    %36 = vst [vmem:[%s2 + $0xa0] sm:$0xff] 0.0
    %37 = vst [vmem:[%s2 + $0xa8] sm:$0xff] 0.0
    %38 = vst [vmem:[%s2 + $0xb0] sm:$0xff] 0.0
    %39 = vst [vmem:[%s2 + $0xb8] sm:$0xff] 0.0
    %40 = vst [vmem:[%s2 + $0xc0] sm:$0xff] 0.0
    %41 = vst [vmem:[%s2 + $0xc8] sm:$0xff] 0.0
    %42 = vst [vmem:[%s2 + $0xd0] sm:$0xff] 0.0
    %43 = vst [vmem:[%s2 + $0xd8] sm:$0xff] 0.0
    %44 = vst [vmem:[%s2 + $0xe0] sm:$0xff] 0.0
    %45 = vst [vmem:[%s2 + $0xe8] sm:$0xff] 0.0
    %46 = vst [vmem:[%s2 + $0xf0] sm:$0xff] 0.0
    %47 = vst [vmem:[%s2 + $0xf8] sm:$0xff] 0.0
  $region13: #{modelfree_gcn_forward.1} parent=0 // pred_fallthru
    _
  %s48 = smul.u32 0, 256
  %v49 = vld [vmem:[%s2] sm:$0xff]
  %v50 = vld [vmem:[%s2 + $0x8] sm:$0xff]
  %v51 = vld [vmem:[%s2 + $0x10] sm:$0xff]
  %v52 = vld [vmem:[%s2 + $0x18] sm:$0xff]
  %v53 = vld [vmem:[%s2 + $0x20] sm:$0xff]
  %v54 = vld [vmem:[%s2 + $0x28] sm:$0xff]
  %v55 = vld [vmem:[%s2 + $0x30] sm:$0xff]
  %v56 = vld [vmem:[%s2 + $0x38] sm:$0xff]
  %v57 = vld [vmem:[%s2 + $0x40] sm:$0xff]
  %v58 = vld [vmem:[%s2 + $0x48] sm:$0xff]
  %v59 = vld [vmem:[%s2 + $0x50] sm:$0xff]
  %v60 = vld [vmem:[%s2 + $0x58] sm:$0xff]
  %v61 = vld [vmem:[%s2 + $0x60] sm:$0xff]
  %v62 = vld [vmem:[%s2 + $0x68] sm:$0xff]
  %v63 = vld [vmem:[%s2 + $0x70] sm:$0xff]
  %v64 = vld [vmem:[%s2 + $0x78] sm:$0xff]
  %v65 = vld [vmem:[%s2 + $0x80] sm:$0xff]
  %v66 = vld [vmem:[%s2 + $0x88] sm:$0xff]
  %v67 = vld [vmem:[%s2 + $0x90] sm:$0xff]
  %v68 = vld [vmem:[%s2 + $0x98] sm:$0xff]
  %v69 = vld [vmem:[%s2 + $0xa0] sm:$0xff]
  %v70 = vld [vmem:[%s2 + $0xa8] sm:$0xff]
  %v71 = vld [vmem:[%s2 + $0xb0] sm:$0xff]
  %v72 = vld [vmem:[%s2 + $0xb8] sm:$0xff]
  %v73 = vld [vmem:[%s2 + $0xc0] sm:$0xff]
  %v74 = vld [vmem:[%s2 + $0xc8] sm:$0xff]
  %v75 = vld [vmem:[%s2 + $0xd0] sm:$0xff]
  %v76 = vld [vmem:[%s2 + $0xd8] sm:$0xff]
  %v77 = vld [vmem:[%s2 + $0xe0] sm:$0xff]
  %v78 = vld [vmem:[%s2 + $0xe8] sm:$0xff]
  %v79 = vld [vmem:[%s2 + $0xf0] sm:$0xff]
  %v80 = vld [vmem:[%s2 + $0xf8] sm:$0xff]
  %v81 = vld [vmem:[%s0] sm:$0xff]
  %v82 = vld [vmem:[%s0 + $0x8] sm:$0xff]
  %v83 = vld [vmem:[%s0 + $0x10] sm:$0xff]
  %v84 = vld [vmem:[%s0 + $0x18] sm:$0xff]
  %v85 = vld [vmem:[%s0 + $0x20] sm:$0xff]
  %v86 = vld [vmem:[%s0 + $0x28] sm:$0xff]
  %v87 = vld [vmem:[%s0 + $0x30] sm:$0xff]
  %v88 = vld [vmem:[%s0 + $0x38] sm:$0xff]
  %v89 = vld [vmem:[%s0 + $0x40] sm:$0xff]
  %v90 = vld [vmem:[%s0 + $0x48] sm:$0xff]
  %v91 = vld [vmem:[%s0 + $0x50] sm:$0xff]
  %v92 = vld [vmem:[%s0 + $0x58] sm:$0xff]
  %v93 = vld [vmem:[%s0 + $0x60] sm:$0xff]
  %v94 = vld [vmem:[%s0 + $0x68] sm:$0xff]
  %v95 = vld [vmem:[%s0 + $0x70] sm:$0xff]
  %v96 = vld [vmem:[%s0 + $0x78] sm:$0xff]
  %v97 = vld [vmem:[%s0 + $0x80] sm:$0xff]
  %v98 = vld [vmem:[%s0 + $0x88] sm:$0xff]
  %v99 = vld [vmem:[%s0 + $0x90] sm:$0xff]
  %v100 = vld [vmem:[%s0 + $0x98] sm:$0xff]
  %v101 = vld [vmem:[%s0 + $0xa0] sm:$0xff]
  %v102 = vld [vmem:[%s0 + $0xa8] sm:$0xff]
  %v103 = vld [vmem:[%s0 + $0xb0] sm:$0xff]
  %v104 = vld [vmem:[%s0 + $0xb8] sm:$0xff]
  %v105 = vld [vmem:[%s0 + $0xc0] sm:$0xff]
  %v106 = vld [vmem:[%s0 + $0xc8] sm:$0xff]
  %v107 = vld [vmem:[%s0 + $0xd0] sm:$0xff]
  %v108 = vld [vmem:[%s0 + $0xd8] sm:$0xff]
  %v109 = vld [vmem:[%s0 + $0xe0] sm:$0xff]
  %v110 = vld [vmem:[%s0 + $0xe8] sm:$0xff]
  %v111 = vld [vmem:[%s0 + $0xf0] sm:$0xff]
  %v112 = vld [vmem:[%s0 + $0xf8] sm:$0xff]
  %s113 = sshra.s32 %s48, 3
  %s114 = sand.u32 %s48, 7
  %s115 = smul.addr %s113, 4
  %s116 = scalar_lea.vmem %s1, %s115
  %v117 = vld [vmem:[%s116] sm:$0xf]
  %v118 = vld [vmem:[%s116 + $0x4] sm:$0xf]
  %v119 = vld [vmem:[%s116 + $0x8] sm:$0xf]
  %v120 = vld [vmem:[%s116 + $0xc] sm:$0xf]
  %v121 = vld [vmem:[%s116 + $0x10] sm:$0xf]
  %v122 = vld [vmem:[%s116 + $0x14] sm:$0xf]
  %v123 = vld [vmem:[%s116 + $0x18] sm:$0xf]
  %v124 = vld [vmem:[%s116 + $0x1c] sm:$0xf]
  %v125 = vld [vmem:[%s116 + $0x20] sm:$0xf]
  %v126 = vld [vmem:[%s116 + $0x24] sm:$0xf]
  %v127 = vld [vmem:[%s116 + $0x28] sm:$0xf]
  %v128 = vld [vmem:[%s116 + $0x2c] sm:$0xf]
  %v129 = vld [vmem:[%s116 + $0x30] sm:$0xf]
  %v130 = vld [vmem:[%s116 + $0x34] sm:$0xf]
  %v131 = vld [vmem:[%s116 + $0x38] sm:$0xf]
  %v132 = vld [vmem:[%s116 + $0x3c] sm:$0xf]
  %v133 = vld [vmem:[%s116 + $0x40] sm:$0xf]
  %v134 = vld [vmem:[%s116 + $0x44] sm:$0xf]
  %v135 = vld [vmem:[%s116 + $0x48] sm:$0xf]
  %v136 = vld [vmem:[%s116 + $0x4c] sm:$0xf]
  %v137 = vld [vmem:[%s116 + $0x50] sm:$0xf]
  %v138 = vld [vmem:[%s116 + $0x54] sm:$0xf]
  %v139 = vld [vmem:[%s116 + $0x58] sm:$0xf]
  %v140 = vld [vmem:[%s116 + $0x5c] sm:$0xf]
  %v141 = vld [vmem:[%s116 + $0x60] sm:$0xf]
  %v142 = vld [vmem:[%s116 + $0x64] sm:$0xf]
  %v143 = vld [vmem:[%s116 + $0x68] sm:$0xf]
  %v144 = vld [vmem:[%s116 + $0x6c] sm:$0xf]
  %v145 = vld [vmem:[%s116 + $0x70] sm:$0xf]
  %v146 = vld [vmem:[%s116 + $0x74] sm:$0xf]
  %v147 = vld [vmem:[%s116 + $0x78] sm:$0xf]
  %v148 = vld [vmem:[%s116 + $0x7c] sm:$0xf]
  %v181 = vunpack.c.l.b16 %v81
  %v182 = vunpack.c.h.b16 %v81
  %v183 = vunpack.c.l.b16 %v82
  %v184 = vunpack.c.h.b16 %v82
  %v185 = vunpack.c.l.b16 %v83
  %v186 = vunpack.c.h.b16 %v83
  %v187 = vunpack.c.l.b16 %v84
  %v188 = vunpack.c.h.b16 %v84
  %v189 = vunpack.c.l.b16 %v85
  %v190 = vunpack.c.h.b16 %v85
  %v191 = vunpack.c.l.b16 %v86
  %v192 = vunpack.c.h.b16 %v86
  %v193 = vunpack.c.l.b16 %v87
  %v194 = vunpack.c.h.b16 %v87
  %v195 = vunpack.c.l.b16 %v88
  %v196 = vunpack.c.h.b16 %v88
  %v197 = vunpack.c.l.b16 %v89
  %v198 = vunpack.c.h.b16 %v89
  %v199 = vunpack.c.l.b16 %v90
  %v200 = vunpack.c.h.b16 %v90
  %v201 = vunpack.c.l.b16 %v91
  %v202 = vunpack.c.h.b16 %v91
  %v203 = vunpack.c.l.b16 %v92
  %v204 = vunpack.c.h.b16 %v92
  %v205 = vunpack.c.l.b16 %v93
  %v206 = vunpack.c.h.b16 %v93
  %v207 = vunpack.c.l.b16 %v94
  %v208 = vunpack.c.h.b16 %v94
  %v209 = vunpack.c.l.b16 %v95
  %v210 = vunpack.c.h.b16 %v95
  %v211 = vunpack.c.l.b16 %v96
  %v212 = vunpack.c.h.b16 %v96
  %v213 = vunpack.c.l.b16 %v97
  %v214 = vunpack.c.h.b16 %v97
  %v215 = vunpack.c.l.b16 %v98
  %v216 = vunpack.c.h.b16 %v98
  %v217 = vunpack.c.l.b16 %v99
  %v218 = vunpack.c.h.b16 %v99
  %v219 = vunpack.c.l.b16 %v100
  %v220 = vunpack.c.h.b16 %v100
  %v221 = vunpack.c.l.b16 %v101
  %v222 = vunpack.c.h.b16 %v101
  %v223 = vunpack.c.l.b16 %v102
  %v224 = vunpack.c.h.b16 %v102
  %v225 = vunpack.c.l.b16 %v103
  %v226 = vunpack.c.h.b16 %v103
  %v227 = vunpack.c.l.b16 %v104
  %v228 = vunpack.c.h.b16 %v104
  %v229 = vunpack.c.l.b16 %v105
  %v230 = vunpack.c.h.b16 %v105
  %v231 = vunpack.c.l.b16 %v106
  %v232 = vunpack.c.h.b16 %v106
  %v233 = vunpack.c.l.b16 %v107
  %v234 = vunpack.c.h.b16 %v107
  %v235 = vunpack.c.l.b16 %v108
  %v236 = vunpack.c.h.b16 %v108
  %v237 = vunpack.c.l.b16 %v109
  %v238 = vunpack.c.h.b16 %v109
  %v239 = vunpack.c.l.b16 %v110
  %v240 = vunpack.c.h.b16 %v110
  %v241 = vunpack.c.l.b16 %v111
  %v242 = vunpack.c.h.b16 %v111
  %v243 = vunpack.c.l.b16 %v112
  %v244 = vunpack.c.h.b16 %v112
  %v245 = vpack.c.b16 %v183, %v181
  %v246 = vpack.c.b16 %v184, %v182
  %v247 = vpack.c.b16 %v187, %v185
  %v248 = vpack.c.b16 %v188, %v186
  %v249 = vpack.c.b16 %v191, %v189
  %v250 = vpack.c.b16 %v192, %v190
  %v251 = vpack.c.b16 %v195, %v193
  %v252 = vpack.c.b16 %v196, %v194
  %v253 = vpack.c.b16 %v199, %v197
  %v254 = vpack.c.b16 %v200, %v198
  %v255 = vpack.c.b16 %v203, %v201
  %v256 = vpack.c.b16 %v204, %v202
  %v257 = vpack.c.b16 %v207, %v205
  %v258 = vpack.c.b16 %v208, %v206
  %v259 = vpack.c.b16 %v211, %v209
  %v260 = vpack.c.b16 %v212, %v210
  %v261 = vpack.c.b16 %v215, %v213
  %v262 = vpack.c.b16 %v216, %v214
  %v263 = vpack.c.b16 %v219, %v217
  %v264 = vpack.c.b16 %v220, %v218
  %v265 = vpack.c.b16 %v223, %v221
  %v266 = vpack.c.b16 %v224, %v222
  %v267 = vpack.c.b16 %v227, %v225
  %v268 = vpack.c.b16 %v228, %v226
  %v269 = vpack.c.b16 %v231, %v229
  %v270 = vpack.c.b16 %v232, %v230
  %v271 = vpack.c.b16 %v235, %v233
  %v272 = vpack.c.b16 %v236, %v234
  %v273 = vpack.c.b16 %v239, %v237
  %v274 = vpack.c.b16 %v240, %v238
  %v275 = vpack.c.b16 %v243, %v241
  %v276 = vpack.c.b16 %v244, %v242
  %v341 = vunpack.c.l.b16 %v117
  %v342 = vunpack.c.l.b16 %v118
  %v343 = vunpack.c.l.b16 %v119
  %v344 = vunpack.c.l.b16 %v120
  %v345 = vunpack.c.l.b16 %v121
  %v346 = vunpack.c.l.b16 %v122
  %v347 = vunpack.c.l.b16 %v123
  %v348 = vunpack.c.l.b16 %v124
  %v349 = vunpack.c.l.b16 %v125
  %v350 = vunpack.c.l.b16 %v126
  %v351 = vunpack.c.l.b16 %v127
  %v352 = vunpack.c.l.b16 %v128
  %v353 = vunpack.c.l.b16 %v129
  %v354 = vunpack.c.l.b16 %v130
  %v355 = vunpack.c.l.b16 %v131
  %v356 = vunpack.c.l.b16 %v132
  %v357 = vunpack.c.l.b16 %v133
  %v358 = vunpack.c.l.b16 %v134
  %v359 = vunpack.c.l.b16 %v135
  %v360 = vunpack.c.l.b16 %v136
  %v361 = vunpack.c.l.b16 %v137
  %v362 = vunpack.c.l.b16 %v138
  %v363 = vunpack.c.l.b16 %v139
  %v364 = vunpack.c.l.b16 %v140
  %v365 = vunpack.c.l.b16 %v141
  %v366 = vunpack.c.l.b16 %v142
  %v367 = vunpack.c.l.b16 %v143
  %v368 = vunpack.c.l.b16 %v144
  %v369 = vunpack.c.l.b16 %v145
  %v370 = vunpack.c.l.b16 %v146
  %v371 = vunpack.c.l.b16 %v147
  %v372 = vunpack.c.l.b16 %v148
  %v373 = vpack.c.b16 %v342, %v341
  %v374 = vpack.c.b16 %v344, %v343
  %v375 = vpack.c.b16 %v346, %v345
  %v376 = vpack.c.b16 %v348, %v347
  %v377 = vpack.c.b16 %v350, %v349
  %v378 = vpack.c.b16 %v352, %v351
  %v379 = vpack.c.b16 %v354, %v353
  %v380 = vpack.c.b16 %v356, %v355
  %v381 = vpack.c.b16 %v358, %v357
  %v382 = vpack.c.b16 %v360, %v359
  %v383 = vpack.c.b16 %v362, %v361
  %v384 = vpack.c.b16 %v364, %v363
  %v385 = vpack.c.b16 %v366, %v365
  %v386 = vpack.c.b16 %v368, %v367
  %v387 = vpack.c.b16 %v370, %v369
  %v388 = vpack.c.b16 %v372, %v371
  %405 = vmatprep.subr.bf16.mxu0 0
  %406 = vmatpush1.bf16.msra.mxu0 %v373
  %407 = vmatprep.subr.bf16.mxu0 0
  %408 = vmatpush1.bf16.msra.mxu0 %v374
  %409 = vmatprep.subr.bf16.mxu0 0
  %410 = vmatpush1.bf16.msra.mxu0 %v375
  %411 = vmatprep.subr.bf16.mxu0 0
  %412 = vmatpush1.bf16.msra.mxu0 %v376
  %413 = vmatprep.subr.bf16.mxu0 0
  %414 = vmatpush1.bf16.msra.mxu0 %v377
  %415 = vmatprep.subr.bf16.mxu0 0
  %416 = vmatpush1.bf16.msra.mxu0 %v378
  %417 = vmatprep.subr.bf16.mxu0 0
  %418 = vmatpush1.bf16.msra.mxu0 %v379
  %419 = vmatprep.subr.bf16.mxu0 0
  %420 = vmatpush1.bf16.msra.mxu0 %v380
  %421 = vmatprep.subr.bf16.mxu0 0
  %422 = vmatpush1.bf16.msra.mxu0 %v381
  %423 = vmatprep.subr.bf16.mxu0 0
  %424 = vmatpush1.bf16.msra.mxu0 %v382
  %425 = vmatprep.subr.bf16.mxu0 0
  %426 = vmatpush1.bf16.msra.mxu0 %v383
  %427 = vmatprep.subr.bf16.mxu0 0
  %428 = vmatpush1.bf16.msra.mxu0 %v384
  %429 = vmatprep.subr.bf16.mxu0 0
  %430 = vmatpush1.bf16.msra.mxu0 %v385
  %431 = vmatprep.subr.bf16.mxu0 0
  %432 = vmatpush1.bf16.msra.mxu0 %v386
  %433 = vmatprep.subr.bf16.mxu0 0
  %434 = vmatpush1.bf16.msra.mxu0 %v387
  %435 = vmatprep.subr.bf16.mxu0 0
  %436 = vmatpush1.bf16.msra.mxu0 %v388
  %437 = vmatprep.mubr.bf16.mxu0 %v246
  %438 = vmatmul.mubr.bf16.gmra.mrb[0].mxu0 %v245
  %v439 = vpop.f32.mrb[0].mxu0
  %v440 = vadd.f32 0.0, %v439
  %v441 = vpop.f32.mrb[0].mxu0
  %v442 = vpop.f32.mrb[0].mxu0
  %v443 = vadd.f32 0.0, %v442
  %v444 = vpop.f32.mrb[0].mxu0
  %445 = vmatprep.mubr.bf16.mxu0 %v248
  %446 = vmatmul.mubr.bf16.gmra.mrb[0].mxu0 %v247
  %v447 = vpop.f32.mrb[0].mxu0
  %v448 = vadd.f32 0.0, %v447
  %v449 = vpop.f32.mrb[0].mxu0
  %v450 = vpop.f32.mrb[0].mxu0
  %v451 = vadd.f32 0.0, %v450
  %v452 = vpop.f32.mrb[0].mxu0
  %453 = vmatprep.mubr.bf16.mxu0 %v250
  %454 = vmatmul.mubr.bf16.gmra.mrb[0].mxu0 %v249
  %v455 = vpop.f32.mrb[0].mxu0
  %v456 = vadd.f32 0.0, %v455
  %v457 = vpop.f32.mrb[0].mxu0
  %v458 = vpop.f32.mrb[0].mxu0
  %v459 = vadd.f32 0.0, %v458
  %v460 = vpop.f32.mrb[0].mxu0
  %461 = vmatprep.mubr.bf16.mxu0 %v252
  %462 = vmatmul.mubr.bf16.gmra.mrb[0].mxu0 %v251
  %v463 = vpop.f32.mrb[0].mxu0
  %v464 = vadd.f32 0.0, %v463
  %v465 = vpop.f32.mrb[0].mxu0
  %v466 = vpop.f32.mrb[0].mxu0
  %v467 = vadd.f32 0.0, %v466
  %v468 = vpop.f32.mrb[0].mxu0
  %469 = vmatprep.mubr.bf16.mxu0 %v254
  %470 = vmatmul.mubr.bf16.gmra.mrb[0].mxu0 %v253
  %v471 = vpop.f32.mrb[0].mxu0
  %v472 = vadd.f32 0.0, %v471
  %v473 = vpop.f32.mrb[0].mxu0
  %v474 = vpop.f32.mrb[0].mxu0
  %v475 = vadd.f32 0.0, %v474
  %v476 = vpop.f32.mrb[0].mxu0
  %477 = vmatprep.mubr.bf16.mxu0 %v256
  %478 = vmatmul.mubr.bf16.gmra.mrb[0].mxu0 %v255
  %v479 = vpop.f32.mrb[0].mxu0
  %v480 = vadd.f32 0.0, %v479
  %v481 = vpop.f32.mrb[0].mxu0
  %v482 = vpop.f32.mrb[0].mxu0
  %v483 = vadd.f32 0.0, %v482
  %v484 = vpop.f32.mrb[0].mxu0
  %485 = vmatprep.mubr.bf16.mxu0 %v258
  %486 = vmatmul.mubr.bf16.gmra.mrb[0].mxu0 %v257
  %v487 = vpop.f32.mrb[0].mxu0
  %v488 = vadd.f32 0.0, %v487
  %v489 = vpop.f32.mrb[0].mxu0
  %v490 = vpop.f32.mrb[0].mxu0
  %v491 = vadd.f32 0.0, %v490
  %v492 = vpop.f32.mrb[0].mxu0
  %493 = vmatprep.mubr.bf16.mxu0 %v260
  %494 = vmatmul.mubr.bf16.gmra.mrb[0].mxu0 %v259
  %v495 = vpop.f32.mrb[0].mxu0
  %v496 = vadd.f32 0.0, %v495
  %v497 = vpop.f32.mrb[0].mxu0
  %v498 = vpop.f32.mrb[0].mxu0
  %v499 = vadd.f32 0.0, %v498
  %v500 = vpop.f32.mrb[0].mxu0
  %501 = vmatprep.mubr.bf16.mxu0 %v262
  %502 = vmatmul.mubr.bf16.gmra.mrb[0].mxu0 %v261
  %v503 = vpop.f32.mrb[0].mxu0
  %v504 = vadd.f32 0.0, %v503
  %v505 = vpop.f32.mrb[0].mxu0
  %v506 = vpop.f32.mrb[0].mxu0
  %v507 = vadd.f32 0.0, %v506
  %v508 = vpop.f32.mrb[0].mxu0
  %509 = vmatprep.mubr.bf16.mxu0 %v264
  %510 = vmatmul.mubr.bf16.gmra.mrb[0].mxu0 %v263
  %v511 = vpop.f32.mrb[0].mxu0
  %v512 = vadd.f32 0.0, %v511
  %v513 = vpop.f32.mrb[0].mxu0
  %v514 = vpop.f32.mrb[0].mxu0
  %v515 = vadd.f32 0.0, %v514
  %v516 = vpop.f32.mrb[0].mxu0
  %517 = vmatprep.mubr.bf16.mxu0 %v266
  %518 = vmatmul.mubr.bf16.gmra.mrb[0].mxu0 %v265
  %v519 = vpop.f32.mrb[0].mxu0
  %v520 = vadd.f32 0.0, %v519
  %v521 = vpop.f32.mrb[0].mxu0
  %v522 = vpop.f32.mrb[0].mxu0
  %v523 = vadd.f32 0.0, %v522
  %v524 = vpop.f32.mrb[0].mxu0
  %525 = vmatprep.mubr.bf16.mxu0 %v268
  %526 = vmatmul.mubr.bf16.gmra.mrb[0].mxu0 %v267
  %v527 = vpop.f32.mrb[0].mxu0
  %v528 = vadd.f32 0.0, %v527
  %v529 = vpop.f32.mrb[0].mxu0
  %v530 = vpop.f32.mrb[0].mxu0
  %v531 = vadd.f32 0.0, %v530
  %v532 = vpop.f32.mrb[0].mxu0
  %533 = vmatprep.mubr.bf16.mxu0 %v270
  %534 = vmatmul.mubr.bf16.gmra.mrb[0].mxu0 %v269
  %v535 = vpop.f32.mrb[0].mxu0
  %v536 = vadd.f32 0.0, %v535
  %v537 = vpop.f32.mrb[0].mxu0
  %v538 = vpop.f32.mrb[0].mxu0
  %v539 = vadd.f32 0.0, %v538
  %v540 = vpop.f32.mrb[0].mxu0
  %541 = vmatprep.mubr.bf16.mxu0 %v272
  %542 = vmatmul.mubr.bf16.gmra.mrb[0].mxu0 %v271
  %v543 = vpop.f32.mrb[0].mxu0
  %v544 = vadd.f32 0.0, %v543
  %v545 = vpop.f32.mrb[0].mxu0
  %v546 = vpop.f32.mrb[0].mxu0
  %v547 = vadd.f32 0.0, %v546
  %v548 = vpop.f32.mrb[0].mxu0
  %549 = vmatprep.mubr.bf16.mxu0 %v274
  %550 = vmatmul.mubr.bf16.gmra.mrb[0].mxu0 %v273
  %v551 = vpop.f32.mrb[0].mxu0
  %v552 = vadd.f32 0.0, %v551
  %v553 = vpop.f32.mrb[0].mxu0
  %v554 = vpop.f32.mrb[0].mxu0
  %v555 = vadd.f32 0.0, %v554
  %v556 = vpop.f32.mrb[0].mxu0
  %557 = vmatprep.mubr.bf16.mxu0 %v276
  %558 = vmatmul.mubr.bf16.gmra.mrb[0].mxu0 %v275
  %v559 = vpop.f32.mrb[0].mxu0
  %v560 = vadd.f32 0.0, %v559
  %v561 = vpop.f32.mrb[0].mxu0
  %v562 = vpop.f32.mrb[0].mxu0
  %v563 = vadd.f32 0.0, %v562
  %v564 = vpop.f32.mrb[0].mxu0
  %565 = vdwg.mxu0
  %v566 = vadd.f32 %v49, %v440
  %v567 = vadd.f32 %v50, %v443
  %v568 = vadd.f32 %v51, %v448
  %v569 = vadd.f32 %v52, %v451
  %v570 = vadd.f32 %v53, %v456
  %v571 = vadd.f32 %v54, %v459
  %v572 = vadd.f32 %v55, %v464
  %v573 = vadd.f32 %v56, %v467
  %v574 = vadd.f32 %v57, %v472
  %v575 = vadd.f32 %v58, %v475
  %v576 = vadd.f32 %v59, %v480
  %v577 = vadd.f32 %v60, %v483
  %v578 = vadd.f32 %v61, %v488
  %v579 = vadd.f32 %v62, %v491
  %v580 = vadd.f32 %v63, %v496
  %v581 = vadd.f32 %v64, %v499
  %v582 = vadd.f32 %v65, %v504
  %v583 = vadd.f32 %v66, %v507
  %v584 = vadd.f32 %v67, %v512
  %v585 = vadd.f32 %v68, %v515
  %v586 = vadd.f32 %v69, %v520
  %v587 = vadd.f32 %v70, %v523
  %v588 = vadd.f32 %v71, %v528
  %v589 = vadd.f32 %v72, %v531
  %v590 = vadd.f32 %v73, %v536
  %v591 = vadd.f32 %v74, %v539
  %v592 = vadd.f32 %v75, %v544
  %v593 = vadd.f32 %v76, %v547
  %v594 = vadd.f32 %v77, %v552
  %v595 = vadd.f32 %v78, %v555
  %v596 = vadd.f32 %v79, %v560
  %v597 = vadd.f32 %v80, %v563
  %598 = vst [vmem:[%s2] sm:$0xff] %v566
  %599 = vst [vmem:[%s2 + $0x8] sm:$0xff] %v567
  %600 = vst [vmem:[%s2 + $0x10] sm:$0xff] %v568
  %601 = vst [vmem:[%s2 + $0x18] sm:$0xff] %v569
  %602 = vst [vmem:[%s2 + $0x20] sm:$0xff] %v570
  %603 = vst [vmem:[%s2 + $0x28] sm:$0xff] %v571
  %604 = vst [vmem:[%s2 + $0x30] sm:$0xff] %v572
  %605 = vst [vmem:[%s2 + $0x38] sm:$0xff] %v573
  %606 = vst [vmem:[%s2 + $0x40] sm:$0xff] %v574
  %607 = vst [vmem:[%s2 + $0x48] sm:$0xff] %v575
  %608 = vst [vmem:[%s2 + $0x50] sm:$0xff] %v576
  %609 = vst [vmem:[%s2 + $0x58] sm:$0xff] %v577
  %610 = vst [vmem:[%s2 + $0x60] sm:$0xff] %v578
  %611 = vst [vmem:[%s2 + $0x68] sm:$0xff] %v579
  %612 = vst [vmem:[%s2 + $0x70] sm:$0xff] %v580
  %613 = vst [vmem:[%s2 + $0x78] sm:$0xff] %v581
  %614 = vst [vmem:[%s2 + $0x80] sm:$0xff] %v582
  %615 = vst [vmem:[%s2 + $0x88] sm:$0xff] %v583
  %616 = vst [vmem:[%s2 + $0x90] sm:$0xff] %v584
  %617 = vst [vmem:[%s2 + $0x98] sm:$0xff] %v585
  %618 = vst [vmem:[%s2 + $0xa0] sm:$0xff] %v586
  %619 = vst [vmem:[%s2 + $0xa8] sm:$0xff] %v587
  %620 = vst [vmem:[%s2 + $0xb0] sm:$0xff] %v588
  %621 = vst [vmem:[%s2 + $0xb8] sm:$0xff] %v589
  %622 = vst [vmem:[%s2 + $0xc0] sm:$0xff] %v590
  %623 = vst [vmem:[%s2 + $0xc8] sm:$0xff] %v591
  %624 = vst [vmem:[%s2 + $0xd0] sm:$0xff] %v592
  %625 = vst [vmem:[%s2 + $0xd8] sm:$0xff] %v593
  %626 = vst [vmem:[%s2 + $0xe0] sm:$0xff] %v594
  %627 = vst [vmem:[%s2 + $0xe8] sm:$0xff] %v595
  %628 = vst [vmem:[%s2 + $0xf0] sm:$0xff] %v596
  %629 = vst [vmem:[%s2 + $0xf8] sm:$0xff] %v597
  // Predicated region
  $region14: #{modelfree_gcn_forward.1} parent=0 // pred_check
    _
  $region15: #{modelfree_gcn_forward.1} parent=0 // pred_check_branch
    %631 = sbr.rel (0) target = $region17
  $region16: #{modelfree_gcn_forward.1} parent=0 // pred_region
    _
  $region17: #{modelfree_gcn_forward.1} parent=0 // pred_fallthru
    _
  // Predicated region
  $region18: #{modelfree_gcn_forward.1} parent=0 // pred_check
    _
  $region19: #{modelfree_gcn_forward.1} parent=0 // pred_check_branch
    %633 = sbr.rel (0) target = $region21
  $region20: #{modelfree_gcn_forward.1} parent=0 // pred_region
    _
  $region21: #{modelfree_gcn_forward.1} parent=0 // pred_fallthru
    _

</llo_original>
